<compile_context>
chip_gen: v7x
topology: tpu7x:2x2x1
jax: 0.10.0
libtpu: 0.0.40
codegen_flags: <defaults>
</compile_context>

<pallas_src>
import math
import numpy as np
import jax
import jax.numpy as jnp
from jax.experimental import pallas as pl
from jax.experimental.pallas import tpu as pltpu

# --- module config: CausalConvNet(num_inputs, num_channels, kernel_size, dropout) ----------
NUM_INPUTS = 32
NUM_CHANNELS = (32, 32)      # residual add (out + x) requires in == out channels (as in PyTorch)
KERNEL_SIZE = 2
DROPOUT = 0.2                # eval mode -> identity

_VMEM = pl.BlockSpec(memory_space=pltpu.MemorySpace.VMEM)


def _level_configs():
    cfgs = []
    for i, cout in enumerate(NUM_CHANNELS):
        cin = NUM_INPUTS if i == 0 else NUM_CHANNELS[i - 1]
        cfgs.append((cin, cout, 2 ** i))          # (in_channels, out_channels, dilation)
    return tuple(cfgs)


def _round8(n):
    return (n + 7) // 8 * 8


def _layout(B, L):
    """Static row layout of the single packed slab, shape (total_rows, B*L)."""
    NBL = B * L
    K = KERNEL_SIZE
    cfgs = _level_configs()
    convs = []                                    # (conv_cin, cout, dilation), 2 per level
    for cin, cout, d in cfgs:
        convs.append((cin, cout, d))              # conv1
        convs.append((cout, cout, d))             # conv2
    r = 0
    conv_rows, bias_rows = [], []
    for _, cout, _ in convs:
        conv_rows.append(r); r += _round8(cout)   # stacked-tap weight block (cout, K*cin)
        bias_rows.append(r); r += _round8(cout)   # bias block (cout, 1), stored in lane 0
    shifts = sorted({(K - 1 - k) * d for _, _, d in convs for k in range(K)} - {0})
    shift_rows = {}
    for s in shifts:
        shift_rows[s] = r; r += _round8(NBL)      # causal shift matrix S_s (NBL, NBL)
    return cfgs, convs, conv_rows, bias_rows, shift_rows, r, NBL


# -------------------------------------------------------------------------------------------
# One-time host-side packing (out of the hot path): weight_norm fold, tap stacking, biases and
# the constant causal shift matrices all go into ONE f32 slab -> a single HBM->VMEM DMA.
# -------------------------------------------------------------------------------------------
def pack_params(params, B, L):
    K = KERNEL_SIZE
    cfgs, convs, conv_rows, bias_rows, shift_rows, total_rows, NBL = _layout(B, L)
    slab = np.zeros((total_rows, NBL), np.float32)
    ci = 0
    for level, (cin, cout, _) in zip(params, cfgs):
        assert cin == cout, "residual add requires cin == cout (PyTorch block has no downsample)"
        for name in ("conv1", "conv2"):
            v = np.asarray(level[name][0], np.float64)
            g = np.asarray(level[name][1], np.float64)
            b = np.asarray(level[name][2], np.float64)
            # torch.nn.utils.weight_norm (dim=0): w = g * v / ||v||_2 over (cin, k) per out ch.
            norm = np.sqrt((v * v).sum(axis=(1, 2), keepdims=True))
            w = g * v / norm                                            # (cout, conv_cin, K)
            conv_cin = w.shape[1]
            assert K * conv_cin <= NBL, "slab lane width must fit the stacked taps"
            wfold = np.transpose(w, (0, 2, 1)).reshape(cout, K * conv_cin)  # [co, k*cin + ci]
            r = conv_rows[ci]; slab[r:r + cout, :K * conv_cin] = wfold
            rb = bias_rows[ci]; slab[rb:rb + cout, 0] = b
            ci += 1
    # Shift matrices: shifted[:, j] = h[:, j - s] within the same batch, else 0 (causal pad).
    for s, r in shift_rows.items():
        j = np.arange(NBL)
        valid = (j % L) >= s
        slab[r + (j - s)[valid], j[valid]] = 1.0
    return jnp.asarray(slab)


# -------------------------------------------------------------------------------------------
# Fused TCN kernel: the whole network in one gridless pallas_call, activations never leave vregs.
# -------------------------------------------------------------------------------------------
def _make_kernel(convs, K, conv_rows, bias_rows, shift_rows, NBL):
    n_levels = len(convs) // 2

    def kernel(x_ref, w_ref, out_ref):
        h = x_ref[...]                                       # (C, B*L) activations in vregs
        ci = 0
        for _level in range(n_levels):                       # static level loop
            res = h                                          # residual kept in registers
            for _conv in range(2):                           # conv1 -> conv2 of the block
                conv_cin, cout, d = convs[ci]
                r, rb = conv_rows[ci], bias_rows[ci]
                ci += 1
                taps = []
                for k in range(K):                           # causal tap x[t - (K-1-k)*d]
                    s = (K - 1 - k) * d
                    if s == 0:
                        taps.append(h)                       # reuse the value already in vregs
                    else:
                        # causal time shift via constant 0/1 matrix on the idle MXU:
                        # no unaligned slices, no relayouts, handles zero padding + batches.
                        sm = w_ref[shift_rows[s]:shift_rows[s] + NBL, :]
                        taps.append(jnp.dot(h, sm, preferred_element_type=jnp.float32))
                operand = taps[0] if K == 1 else jnp.concatenate(taps, axis=0)   # (K*cin, B*L)
                wfold = w_ref[r:r + cout, :K * conv_cin]     # (cout, K*cin) aligned static slice
                bias = w_ref[rb:rb + cout, :1]               # (cout, 1)
                y = jnp.dot(wfold, operand, preferred_element_type=jnp.float32) + bias
                h = jnp.maximum(y, 0.0)                      # ReLU (+ eval-mode dropout = id)
            h = jnp.maximum(h + res, 0.0)                    # block output: relu(out + x)
        out_ref[...] = h                                     # 128-lane dense, unmasked store

    return kernel


# -------------------------------------------------------------------------------------------
# Forward wrapper
# -------------------------------------------------------------------------------------------
def causal_conv_net_forward(packed_slab, x):
    """x: (B, C_in, L) float32 -> (B, C_out, L); packed_slab from pack_params(params, B, L)."""
    B, C0, L = x.shape
    cfgs, convs, conv_rows, bias_rows, shift_rows, total_rows, NBL = _layout(B, L)
    assert C0 == cfgs[0][0]
    assert packed_slab.shape == (total_rows, NBL)
    # Channels on sublanes, (batch*time) on lanes -> fully lane-dense vregs/stores in-kernel.
    x2 = jnp.transpose(x, (1, 0, 2)).reshape(C0, NBL).astype(jnp.float32)
    c_last = cfgs[-1][1]
    out2 = pl.pallas_call(
        _make_kernel(convs, KERNEL_SIZE, conv_rows, bias_rows, shift_rows, NBL),
        out_shape=jax.ShapeDtypeStruct((c_last, NBL), jnp.float32),
        in_specs=[_VMEM, _VMEM],
        out_specs=_VMEM,
        # Gridless: total VMEM use is ~0.3 MiB (fits v5e/v6e/v7x scoped defaults easily).
        # When scaling B/L: add a grid over batch ("parallel") + chunked L, and budget VMEM
        # explicitly for v7x's 64 MiB.
    )(x2, packed_slab)
    return jnp.transpose(out2.reshape(c_last, B, L), (1, 0, 2))


# -------------------------------------------------------------------------------------------
# Deterministic parameter init (PyTorch Conv1d default uniform bounds; weight_norm v/g/bias)
# -------------------------------------------------------------------------------------------
def init_params(key):
    params = []
    for cin, cout, _ in _level_configs():
        level = {}
        for name, c_in in (("conv1", cin), ("conv2", cout)):
            key, kv, kg, kb = jax.random.split(key, 4)
            bound = 1.0 / math.sqrt(c_in * KERNEL_SIZE)
            v = jax.random.uniform(kv, (cout, c_in, KERNEL_SIZE), jnp.float32, -bound, bound)
            g = jax.random.uniform(kg, (cout, 1, 1), jnp.float32, 0.5, 1.5)
            b = jax.random.uniform(kb, (cout,), jnp.float32, -bound, bound)
            level[name] = (v, g, b)
        params.append(level)
    return params


# -------------------------------------------------------------------------------------------
# Pure-numpy reference (direct PyTorch semantics: conv1d + chomp + relu + residual relu)
# -------------------------------------------------------------------------------------------
def _np_eff_weight(v, g):
    norm = np.sqrt((v * v).sum(axis=(1, 2), keepdims=True))
    return g * v / norm


def _np_causal_conv(x, w, b, dilation, padding):
    B, cin, L = x.shape
    cout, _, K = w.shape
    xp = np.pad(x, ((0, 0), (0, 0), (padding, padding)))
    lout = L + 2 * padding - dilation * (K - 1)
    y = np.zeros((B, cout, lout), np.float64)
    for k in range(K):
        y += np.einsum("oc,bct->bot", w[:, :, k], xp[:, :, k * dilation:k * dilation + lout])
    y += b[None, :, None]
    return y[:, :, :L]                                        # Chomp1d(padding)


def _np_forward(params, x):
    p = jax.tree_util.tree_map(np.asarray, params)
    x = np.asarray(x, np.float64)
    for level, (cin, cout, d) in zip(p, _level_configs()):
        pad = (KERNEL_SIZE - 1) * d
        v1, g1, b1 = level["conv1"]
        v2, g2, b2 = level["conv2"]
        h = np.maximum(_np_causal_conv(x, _np_eff_weight(v1, g1), b1, d, pad), 0.0)
        h = np.maximum(_np_causal_conv(h, _np_eff_weight(v2, g2), b2, d, pad), 0.0)
        x = np.maximum(h + x, 0.0)
    return x


# -------------------------------------------------------------------------------------------
if __name__ == "__main__":
    key = jax.random.PRNGKey(0)
    k_params, k_x = jax.random.split(key)
    params = init_params(k_params)

    B, L = 2, 64
    x = jax.random.normal(k_x, (B, NUM_INPUTS, L), jnp.float32)

    packed = pack_params(params, B, L)            # parameter-only host work, done once
    fwd = jax.jit(causal_conv_net_forward)
    out = jax.block_until_ready(fwd(packed, x))

    ref = _np_forward(params, x)
    np.testing.assert_allclose(np.asarray(out), ref, rtol=2e-2, atol=2e-2)
    print("KERNEL_OK")
</pallas_src>

<mosaic_0001>
module attributes {stable_mosaic.version = 11 : i64} {
  func.func @kernel(%arg0: memref<32x128xf32, #tpu.memory_space<vmem>>, %arg1: memref<512x128xf32, #tpu.memory_space<vmem>>, %arg2: memref<32x128xf32, #tpu.memory_space<vmem>>) attributes {dimension_semantics = [], scalar_prefetch = 0 : i64, scratch_operands = 0 : i64, tpu.core_type = #tpu.core_type<tc>} {
    %c0 = arith.constant 0 : index
    %c0_0 = arith.constant 0 : index
    %0 = vector.load %arg0[%c0, %c0_0] : memref<32x128xf32, #tpu.memory_space<vmem>>, vector<32x128xf32>
    %c256 = arith.constant 256 : index
    %c0_1 = arith.constant 0 : index
    %1 = vector.load %arg1[%c256, %c0_1] : memref<512x128xf32, #tpu.memory_space<vmem>>, vector<128x128xf32>
    %cst = arith.constant dense<0.000000e+00> : vector<32x128xf32>
    %2 = tpu.matmul %0, %1, %cst {dimension_numbers = #tpu.dot_dimension_numbers<[1], [0], [0], [1], [0, 0, 1, 1], [], []>} : vector<32x128xf32>, vector<128x128xf32>, vector<32x128xf32> -> vector<32x128xf32>
    %3 = tpu.concatenate %2, %0 in 0 : vector<32x128xf32>, vector<32x128xf32> -> vector<64x128xf32>
    %c0_2 = arith.constant 0 : index
    %c0_3 = arith.constant 0 : index
    %4 = vector.load %arg1[%c0_2, %c0_3] : memref<512x128xf32, #tpu.memory_space<vmem>>, vector<32x64xf32>
    %c32 = arith.constant 32 : index
    %c0_4 = arith.constant 0 : index
    %5 = vector.load %arg1[%c32, %c0_4] : memref<512x128xf32, #tpu.memory_space<vmem>>, vector<32x1xf32>
    %cst_5 = arith.constant dense<0.000000e+00> : vector<32x128xf32>
    %6 = tpu.matmul %4, %3, %cst_5 {dimension_numbers = #tpu.dot_dimension_numbers<[1], [0], [0], [1], [0, 0, 1, 1], [], []>} : vector<32x64xf32>, vector<64x128xf32>, vector<32x128xf32> -> vector<32x128xf32>
    %7 = vector.broadcast %5 : vector<32x1xf32> to vector<32x128xf32>
    %8 = arith.addf %6, %7 : vector<32x128xf32>
    %cst_6 = arith.constant 0.000000e+00 : f32
    %9 = vector.broadcast %cst_6 : f32 to vector<32x128xf32>
    %10 = arith.maximumf %8, %9 : vector<32x128xf32>
    %c256_7 = arith.constant 256 : index
    %c0_8 = arith.constant 0 : index
    %11 = vector.load %arg1[%c256_7, %c0_8] : memref<512x128xf32, #tpu.memory_space<vmem>>, vector<128x128xf32>
    %cst_9 = arith.constant dense<0.000000e+00> : vector<32x128xf32>
    %12 = tpu.matmul %10, %11, %cst_9 {dimension_numbers = #tpu.dot_dimension_numbers<[1], [0], [0], [1], [0, 0, 1, 1], [], []>} : vector<32x128xf32>, vector<128x128xf32>, vector<32x128xf32> -> vector<32x128xf32>
    %13 = tpu.concatenate %12, %10 in 0 : vector<32x128xf32>, vector<32x128xf32> -> vector<64x128xf32>
    %c64 = arith.constant 64 : index
    %c0_10 = arith.constant 0 : index
    %14 = vector.load %arg1[%c64, %c0_10] : memref<512x128xf32, #tpu.memory_space<vmem>>, vector<32x64xf32>
    %c96 = arith.constant 96 : index
    %c0_11 = arith.constant 0 : index
    %15 = vector.load %arg1[%c96, %c0_11] : memref<512x128xf32, #tpu.memory_space<vmem>>, vector<32x1xf32>
    %cst_12 = arith.constant dense<0.000000e+00> : vector<32x128xf32>
    %16 = tpu.matmul %14, %13, %cst_12 {dimension_numbers = #tpu.dot_dimension_numbers<[1], [0], [0], [1], [0, 0, 1, 1], [], []>} : vector<32x64xf32>, vector<64x128xf32>, vector<32x128xf32> -> vector<32x128xf32>
    %17 = vector.broadcast %15 : vector<32x1xf32> to vector<32x128xf32>
    %18 = arith.addf %16, %17 : vector<32x128xf32>
    %cst_13 = arith.constant 0.000000e+00 : f32
    %19 = vector.broadcast %cst_13 : f32 to vector<32x128xf32>
    %20 = arith.maximumf %18, %19 : vector<32x128xf32>
    %21 = arith.addf %20, %0 : vector<32x128xf32>
    %cst_14 = arith.constant 0.000000e+00 : f32
    %22 = vector.broadcast %cst_14 : f32 to vector<32x128xf32>
    %23 = arith.maximumf %21, %22 : vector<32x128xf32>
    %c384 = arith.constant 384 : index
    %c0_15 = arith.constant 0 : index
    %24 = vector.load %arg1[%c384, %c0_15] : memref<512x128xf32, #tpu.memory_space<vmem>>, vector<128x128xf32>
    %cst_16 = arith.constant dense<0.000000e+00> : vector<32x128xf32>
    %25 = tpu.matmul %23, %24, %cst_16 {dimension_numbers = #tpu.dot_dimension_numbers<[1], [0], [0], [1], [0, 0, 1, 1], [], []>} : vector<32x128xf32>, vector<128x128xf32>, vector<32x128xf32> -> vector<32x128xf32>
    %26 = tpu.concatenate %25, %23 in 0 : vector<32x128xf32>, vector<32x128xf32> -> vector<64x128xf32>
    %c128 = arith.constant 128 : index
    %c0_17 = arith.constant 0 : index
    %27 = vector.load %arg1[%c128, %c0_17] : memref<512x128xf32, #tpu.memory_space<vmem>>, vector<32x64xf32>
    %c160 = arith.constant 160 : index
    %c0_18 = arith.constant 0 : index
    %28 = vector.load %arg1[%c160, %c0_18] : memref<512x128xf32, #tpu.memory_space<vmem>>, vector<32x1xf32>
    %cst_19 = arith.constant dense<0.000000e+00> : vector<32x128xf32>
    %29 = tpu.matmul %27, %26, %cst_19 {dimension_numbers = #tpu.dot_dimension_numbers<[1], [0], [0], [1], [0, 0, 1, 1], [], []>} : vector<32x64xf32>, vector<64x128xf32>, vector<32x128xf32> -> vector<32x128xf32>
    %30 = vector.broadcast %28 : vector<32x1xf32> to vector<32x128xf32>
    %31 = arith.addf %29, %30 : vector<32x128xf32>
    %cst_20 = arith.constant 0.000000e+00 : f32
    %32 = vector.broadcast %cst_20 : f32 to vector<32x128xf32>
    %33 = arith.maximumf %31, %32 : vector<32x128xf32>
    %c384_21 = arith.constant 384 : index
    %c0_22 = arith.constant 0 : index
    %34 = vector.load %arg1[%c384_21, %c0_22] : memref<512x128xf32, #tpu.memory_space<vmem>>, vector<128x128xf32>
    %cst_23 = arith.constant dense<0.000000e+00> : vector<32x128xf32>
    %35 = tpu.matmul %33, %34, %cst_23 {dimension_numbers = #tpu.dot_dimension_numbers<[1], [0], [0], [1], [0, 0, 1, 1], [], []>} : vector<32x128xf32>, vector<128x128xf32>, vector<32x128xf32> -> vector<32x128xf32>
    %36 = tpu.concatenate %35, %33 in 0 : vector<32x128xf32>, vector<32x128xf32> -> vector<64x128xf32>
    %c192 = arith.constant 192 : index
    %c0_24 = arith.constant 0 : index
    %37 = vector.load %arg1[%c192, %c0_24] : memref<512x128xf32, #tpu.memory_space<vmem>>, vector<32x64xf32>
    %c224 = arith.constant 224 : index
    %c0_25 = arith.constant 0 : index
    %38 = vector.load %arg1[%c224, %c0_25] : memref<512x128xf32, #tpu.memory_space<vmem>>, vector<32x1xf32>
    %cst_26 = arith.constant dense<0.000000e+00> : vector<32x128xf32>
    %39 = tpu.matmul %37, %36, %cst_26 {dimension_numbers = #tpu.dot_dimension_numbers<[1], [0], [0], [1], [0, 0, 1, 1], [], []>} : vector<32x64xf32>, vector<64x128xf32>, vector<32x128xf32> -> vector<32x128xf32>
    %40 = vector.broadcast %38 : vector<32x1xf32> to vector<32x128xf32>
    %41 = arith.addf %39, %40 : vector<32x128xf32>
    %cst_27 = arith.constant 0.000000e+00 : f32
    %42 = vector.broadcast %cst_27 : f32 to vector<32x128xf32>
    %43 = arith.maximumf %41, %42 : vector<32x128xf32>
    %44 = arith.addf %43, %23 : vector<32x128xf32>
    %cst_28 = arith.constant 0.000000e+00 : f32
    %45 = vector.broadcast %cst_28 : f32 to vector<32x128xf32>
    %46 = arith.maximumf %44, %45 : vector<32x128xf32>
    %c0_29 = arith.constant 0 : index
    %c0_30 = arith.constant 0 : index
    %47 = vector.load %arg2[%c0_29, %c0_30] : memref<32x128xf32, #tpu.memory_space<vmem>>, vector<32x128xf32>
    tpu.vector_store %arg2[%c0_29, %c0_30], %46 {strides = array<i32>} : memref<32x128xf32, #tpu.memory_space<vmem>>, vector<32x128xf32>,
    return
  }
}

</mosaic_0001>

<llo_original>
// kernel: causal_conv_net_forward.1
$region0: #{causal_conv_net_forward.1}
  #allocation0 [shape = 'u32[]', space=smem, size = 0x4, offset = 0x4, fixed_abs, tag = 'smem constant byte address 0x4 - core index']
  #allocation1 [shape = 'u32[144,128]{1,0:T(1,128)}', space=vmem, size = 0x12000, scoped, tag = 'internal scratch']
  %s0 = inlined_call_operand.vmem [shape: f32[32,128], index: 0, kind: input, shape index: {}]
  %s1 = inlined_call_operand.hbm [shape: f32[512,128], index: 1, kind: input, shape index: {}]
  %s2 = inlined_call_operand.vmem [shape: f32[32,128], index: 2, kind: output, shape index: {}]
  %s3 = sld [smem:[#allocation0]]
  $region22: #{causal_conv_net_forward.1} parent=0
    _
  %s5 = ssub.s32 1, %s3
  %s6 = scalar_select 0, %s5, %s3
  $region1: #{causal_conv_net_forward.1} parent=0
    #allocation2 [shape = 'u8[262144]{0}', space=vmem, size = 0x40000, scoped, tag = 'input window, operand 1, single buffered']
    #allocation3 [shape = 's32[1]{0}', space=sflag, size = 0x4, scoped, tag = 'scoped memory for causal_conv_net_forward.1']
    %7 = vsyncpa [#allocation3], 0
    // Predicated region
    $region2: #{causal_conv_net_forward.1} parent=1 // pred_check
      _
    $region3: #{causal_conv_net_forward.1} parent=1 // pred_check_branch
      %9 = sbr.rel (0) target = $region5
    $region4: #{causal_conv_net_forward.1} parent=1 // pred_region
      _
    $region5: #{causal_conv_net_forward.1} parent=1 // pred_fallthru
      _
    // Predicated region
    $region6: #{causal_conv_net_forward.1} parent=1 // pred_check
      _
    $region7: #{causal_conv_net_forward.1} parent=1 // pred_check_branch
      %11 = sbr.rel (0) target = $region9
    $region8: #{causal_conv_net_forward.1} parent=1 // pred_region
      %s13 = ssub.s32 8192, 8192
      %14 = vsyncadd [#allocation3], %s13
      %s15 = sshll.u32 [#allocation2], 4
      %s16 = int_to_ptr.vmem [resolvable:$true] %s15
      %21 = dma.hbm_to_vmem [thread:$0]  %s1, 8192, %s16, [#allocation3], 128, 128, 8
    $region9: #{causal_conv_net_forward.1} parent=1 // pred_fallthru
      _
    // Predicated region
    $region10: #{causal_conv_net_forward.1} parent=1 // pred_check
      _
    $region11: #{causal_conv_net_forward.1} parent=1 // pred_check_branch
      %23 = sbr.rel (0) target = $region13
    $region12: #{causal_conv_net_forward.1} parent=1 // pred_region
      %24 = dma.done [#allocation3], 8192
    $region13: #{causal_conv_net_forward.1} parent=1 // pred_fallthru
      _
    %v25 = vld [vmem:[%s0] sm:$0xff]
    %v26 = vld [vmem:[%s0 + $0x8] sm:$0xff]
    %v27 = vld [vmem:[%s0 + $0x10] sm:$0xff]
    %v28 = vld [vmem:[%s0 + $0x18] sm:$0xff]
    %v29 = vld [vmem:[#allocation2 + $0x100] sm:$0xff]
    %v30 = vld [vmem:[#allocation2 + $0x108] sm:$0xff]
    %v31 = vld [vmem:[#allocation2 + $0x110] sm:$0xff]
    %v32 = vld [vmem:[#allocation2 + $0x118] sm:$0xff]
    %v33 = vld [vmem:[#allocation2 + $0x120] sm:$0xff]
    %v34 = vld [vmem:[#allocation2 + $0x128] sm:$0xff]
    %v35 = vld [vmem:[#allocation2 + $0x130] sm:$0xff]
    %v36 = vld [vmem:[#allocation2 + $0x138] sm:$0xff]
    %v37 = vld [vmem:[#allocation2 + $0x140] sm:$0xff]
    %v38 = vld [vmem:[#allocation2 + $0x148] sm:$0xff]
    %v39 = vld [vmem:[#allocation2 + $0x150] sm:$0xff]
    %v40 = vld [vmem:[#allocation2 + $0x158] sm:$0xff]
    %v41 = vld [vmem:[#allocation2 + $0x160] sm:$0xff]
    %v42 = vld [vmem:[#allocation2 + $0x168] sm:$0xff]
    %v43 = vld [vmem:[#allocation2 + $0x170] sm:$0xff]
    %v44 = vld [vmem:[#allocation2 + $0x178] sm:$0xff]
    %45 = vmatprep.subr.mxu0 0.0
    %46 = vmatpush1.msra.mxu0 %v29
    %47 = vmatprep.subr.mxu0 0.0
    %48 = vmatpush1.msra.mxu0 %v30
    %49 = vmatprep.subr.mxu0 0.0
    %50 = vmatpush1.msra.mxu0 %v31
    %51 = vmatprep.subr.mxu0 0.0
    %52 = vmatpush1.msra.mxu0 %v32
    %53 = vmatprep.subr.mxu0 0.0
    %54 = vmatpush1.msra.mxu0 %v33
    %55 = vmatprep.subr.mxu0 0.0
    %56 = vmatpush1.msra.mxu0 %v34
    %57 = vmatprep.subr.mxu0 0.0
    %58 = vmatpush1.msra.mxu0 %v35
    %59 = vmatprep.subr.mxu0 0.0
    %60 = vmatpush1.msra.mxu0 %v36
    %61 = vmatprep.subr.mxu0 0.0
    %62 = vmatpush1.msra.mxu0 %v37
    %63 = vmatprep.subr.mxu0 0.0
    %64 = vmatpush1.msra.mxu0 %v38
    %65 = vmatprep.subr.mxu0 0.0
    %66 = vmatpush1.msra.mxu0 %v39
    %67 = vmatprep.subr.mxu0 0.0
    %68 = vmatpush1.msra.mxu0 %v40
    %69 = vmatprep.subr.mxu0 0.0
    %70 = vmatpush1.msra.mxu0 %v41
    %71 = vmatprep.subr.mxu0 0.0
    %72 = vmatpush1.msra.mxu0 %v42
    %73 = vmatprep.subr.mxu0 0.0
    %74 = vmatpush1.msra.mxu0 %v43
    %75 = vmatprep.subr.mxu0 0.0
    %76 = vmatpush1.msra.mxu0 %v44
    %77 = vmatprep.subr.mxu0 0.0
    %78 = vmatpush1.msra.mxu0 0.0
    %79 = vmatprep.subr.mxu0 0.0
    %80 = vmatpush1.msra.mxu0 0.0
    %81 = vmatprep.subr.mxu0 0.0
    %82 = vmatpush1.msra.mxu0 0.0
    %83 = vmatprep.subr.mxu0 0.0
    %84 = vmatpush1.msra.mxu0 0.0
    %85 = vmatprep.subr.mxu0 0.0
    %86 = vmatpush1.msra.mxu0 0.0
    %87 = vmatprep.subr.mxu0 0.0
    %88 = vmatpush1.msra.mxu0 0.0
    %89 = vmatprep.subr.mxu0 0.0
    %90 = vmatpush1.msra.mxu0 0.0
    %91 = vmatprep.subr.mxu0 0.0
    %92 = vmatpush1.msra.mxu0 0.0
    %93 = vmatprep.subr.mxu0 0.0
    %94 = vmatpush1.msra.mxu0 0.0
    %95 = vmatprep.subr.mxu0 0.0
    %96 = vmatpush1.msra.mxu0 0.0
    %97 = vmatprep.subr.mxu0 0.0
    %98 = vmatpush1.msra.mxu0 0.0
    %99 = vmatprep.subr.mxu0 0.0
    %100 = vmatpush1.msra.mxu0 0.0
    %101 = vmatprep.subr.mxu0 0.0
    %102 = vmatpush1.msra.mxu0 0.0
    %103 = vmatprep.subr.mxu0 0.0
    %104 = vmatpush1.msra.mxu0 0.0
    %105 = vmatprep.subr.mxu0 0.0
    %106 = vmatpush1.msra.mxu0 0.0
    %107 = vmatprep.subr.mxu0 0.0
    %108 = vmatpush1.msra.mxu0 0.0
    %109 = vmatprep.mubr.f32.mxu0 0.0
    %110 = vmatmul.mubr.f32.gmra.mrb[0].mxu0 %v25
    %v111 = vpop.f32.mrb[0].mxu0
    %v112 = vadd.f32 0.0, %v111
    %v113 = vpop.f32.mrb[0].mxu0
    %114 = vmatprep.mubr.f32.mxu0 0.0
    %115 = vmatmul.mubr.f32.gmra.mrb[0].mxu0 %v26
    %v116 = vpop.f32.mrb[0].mxu0
    %v117 = vadd.f32 0.0, %v116
    %v118 = vpop.f32.mrb[0].mxu0
    %119 = vmatprep.mubr.f32.mxu0 0.0
    %120 = vmatmul.mubr.f32.gmra.mrb[0].mxu0 %v27
    %v121 = vpop.f32.mrb[0].mxu0
    %v122 = vadd.f32 0.0, %v121
    %v123 = vpop.f32.mrb[0].mxu0
    %124 = vmatprep.mubr.f32.mxu0 0.0
    %125 = vmatmul.mubr.f32.gmra.mrb[0].mxu0 %v28
    %v126 = vpop.f32.mrb[0].mxu0
    %v127 = vadd.f32 0.0, %v126
    %v128 = vpop.f32.mrb[0].mxu0
    %129 = vdwg.mxu0
    %v130 = vld [vmem:[#allocation2] sm:$0xff]
    %v131 = vld [vmem:[#allocation2 + $0x8] sm:$0xff]
    %v132 = vld [vmem:[#allocation2 + $0x10] sm:$0xff]
    %v133 = vld [vmem:[#allocation2 + $0x18] sm:$0xff]
    %v134 = vld [vmem:[#allocation2 + $0x20] sm:$0xff]
    %v135 = vld [vmem:[#allocation2 + $0x28] sm:$0xff]
    %v136 = vld [vmem:[#allocation2 + $0x30] sm:$0xff]
    %v137 = vld [vmem:[#allocation2 + $0x38] sm:$0xff]
    %139 = vset.pattern.permute.xlu0 0
    %140 = vperm.xlu0 %139, %v134
    %v141 = vpop.permute.xlu0 %140
    %144 = vset.pattern.permute.xlu0 0
    %145 = vperm.xlu0 %144, %v135
    %v146 = vpop.permute.xlu0 %145
    %149 = vset.pattern.permute.xlu0 0
    %150 = vperm.xlu0 %149, %v136
    %v151 = vpop.permute.xlu0 %150
    %154 = vset.pattern.permute.xlu0 0
    %155 = vperm.xlu0 %154, %v137
    %v156 = vpop.permute.xlu0 %155
    %vm158 = vcmask 523264
    %v160 = vsel %vm158, %v130, 0
    %v163 = vsel %vm158, %v131, 0
    %v166 = vsel %vm158, %v132, 0
    %v169 = vsel %vm158, %v133, 0
    %171 = vmatprep.subr.mxu0 0.0
    %172 = vmatpush1.msra.mxu0 %v112
    %173 = vmatprep.subr.mxu0 0.0
    %174 = vmatpush1.msra.mxu0 %v117
    %175 = vmatprep.subr.mxu0 0.0
    %176 = vmatpush1.msra.mxu0 %v122
    %177 = vmatprep.subr.mxu0 0.0
    %178 = vmatpush1.msra.mxu0 %v127
    %179 = vmatprep.subr.mxu0 0.0
    %180 = vmatpush1.msra.mxu0 %v25
    %181 = vmatprep.subr.mxu0 0.0
    %182 = vmatpush1.msra.mxu0 %v26
    %183 = vmatprep.subr.mxu0 0.0
    %184 = vmatpush1.msra.mxu0 %v27
    %185 = vmatprep.subr.mxu0 0.0
    %186 = vmatpush1.msra.mxu0 %v28
    %187 = vmatprep.subr.mxu0 0.0
    %188 = vmatpush1.msra.mxu0 0.0
    %189 = vmatprep.subr.mxu0 0.0
    %190 = vmatpush1.msra.mxu0 0.0
    %191 = vmatprep.subr.mxu0 0.0
    %192 = vmatpush1.msra.mxu0 0.0
    %193 = vmatprep.subr.mxu0 0.0
    %194 = vmatpush1.msra.mxu0 0.0
    %195 = vmatprep.subr.mxu0 0.0
    %196 = vmatpush1.msra.mxu0 0.0
    %197 = vmatprep.subr.mxu0 0.0
    %198 = vmatpush1.msra.mxu0 0.0
    %199 = vmatprep.subr.mxu0 0.0
    %200 = vmatpush1.msra.mxu0 0.0
    %201 = vmatprep.subr.mxu0 0.0
    %202 = vmatpush1.msra.mxu0 0.0
    %203 = vmatprep.subr.mxu0 0.0
    %204 = vmatpush1.msra.mxu0 0.0
    %205 = vmatprep.subr.mxu0 0.0
    %206 = vmatpush1.msra.mxu0 0.0
    %207 = vmatprep.subr.mxu0 0.0
    %208 = vmatpush1.msra.mxu0 0.0
    %209 = vmatprep.subr.mxu0 0.0
    %210 = vmatpush1.msra.mxu0 0.0
    %211 = vmatprep.subr.mxu0 0.0
    %212 = vmatpush1.msra.mxu0 0.0
    %213 = vmatprep.subr.mxu0 0.0
    %214 = vmatpush1.msra.mxu0 0.0
    %215 = vmatprep.subr.mxu0 0.0
    %216 = vmatpush1.msra.mxu0 0.0
    %217 = vmatprep.subr.mxu0 0.0
    %218 = vmatpush1.msra.mxu0 0.0
    %219 = vmatprep.subr.mxu0 0.0
    %220 = vmatpush1.msra.mxu0 0.0
    %221 = vmatprep.subr.mxu0 0.0
    %222 = vmatpush1.msra.mxu0 0.0
    %223 = vmatprep.subr.mxu0 0.0
    %224 = vmatpush1.msra.mxu0 0.0
    %225 = vmatprep.subr.mxu0 0.0
    %226 = vmatpush1.msra.mxu0 0.0
    %227 = vmatprep.subr.mxu0 0.0
    %228 = vmatpush1.msra.mxu0 0.0
    %229 = vmatprep.subr.mxu0 0.0
    %230 = vmatpush1.msra.mxu0 0.0
    %231 = vmatprep.subr.mxu0 0.0
    %232 = vmatpush1.msra.mxu0 0.0
    %233 = vmatprep.subr.mxu0 0.0
    %234 = vmatpush1.msra.mxu0 0.0
    %235 = vmatprep.mubr.f32.mxu0 0.0
    %236 = vmatmul.mubr.f32.gmra.mrb[0].mxu0 %v160
    %v237 = vpop.f32.mrb[0].mxu0
    %v238 = vadd.f32 %v141, %v237
    %v239 = vpop.f32.mrb[0].mxu0
    %240 = vmatprep.mubr.f32.mxu0 0.0
    %241 = vmatmul.mubr.f32.gmra.mrb[0].mxu0 %v163
    %v242 = vpop.f32.mrb[0].mxu0
    %v243 = vadd.f32 %v146, %v242
    %v244 = vpop.f32.mrb[0].mxu0
    %245 = vmatprep.mubr.f32.mxu0 0.0
    %246 = vmatmul.mubr.f32.gmra.mrb[0].mxu0 %v166
    %v247 = vpop.f32.mrb[0].mxu0
    %v248 = vadd.f32 %v151, %v247
    %v249 = vpop.f32.mrb[0].mxu0
    %250 = vmatprep.mubr.f32.mxu0 0.0
    %251 = vmatmul.mubr.f32.gmra.mrb[0].mxu0 %v169
    %v252 = vpop.f32.mrb[0].mxu0
    %v253 = vadd.f32 %v156, %v252
    %v254 = vpop.f32.mrb[0].mxu0
    %255 = vdwg.mxu0
    %v256 = vmax.f32 %v238, 0.0
    %v257 = vmax.f32 %v243, 0.0
    %v258 = vmax.f32 %v248, 0.0
    %v259 = vmax.f32 %v253, 0.0
    %260 = vmatprep.subr.mxu0 0.0
    %261 = vmatpush1.msra.mxu0 %v29
    %262 = vmatprep.subr.mxu0 0.0
    %263 = vmatpush1.msra.mxu0 %v30
    %264 = vmatprep.subr.mxu0 0.0
    %265 = vmatpush1.msra.mxu0 %v31
    %266 = vmatprep.subr.mxu0 0.0
    %267 = vmatpush1.msra.mxu0 %v32
    %268 = vmatprep.subr.mxu0 0.0
    %269 = vmatpush1.msra.mxu0 %v33
    %270 = vmatprep.subr.mxu0 0.0
    %271 = vmatpush1.msra.mxu0 %v34
    %272 = vmatprep.subr.mxu0 0.0
    %273 = vmatpush1.msra.mxu0 %v35
    %274 = vmatprep.subr.mxu0 0.0
    %275 = vmatpush1.msra.mxu0 %v36
    %276 = vmatprep.subr.mxu0 0.0
    %277 = vmatpush1.msra.mxu0 %v37
    %278 = vmatprep.subr.mxu0 0.0
    %279 = vmatpush1.msra.mxu0 %v38
    %280 = vmatprep.subr.mxu0 0.0
    %281 = vmatpush1.msra.mxu0 %v39
    %282 = vmatprep.subr.mxu0 0.0
    %283 = vmatpush1.msra.mxu0 %v40
    %284 = vmatprep.subr.mxu0 0.0
    %285 = vmatpush1.msra.mxu0 %v41
    %286 = vmatprep.subr.mxu0 0.0
    %287 = vmatpush1.msra.mxu0 %v42
    %288 = vmatprep.subr.mxu0 0.0
    %289 = vmatpush1.msra.mxu0 %v43
    %290 = vmatprep.subr.mxu0 0.0
    %291 = vmatpush1.msra.mxu0 %v44
    %292 = vmatprep.subr.mxu0 0.0
    %293 = vmatpush1.msra.mxu0 0.0
    %294 = vmatprep.subr.mxu0 0.0
    %295 = vmatpush1.msra.mxu0 0.0
    %296 = vmatprep.subr.mxu0 0.0
    %297 = vmatpush1.msra.mxu0 0.0
    %298 = vmatprep.subr.mxu0 0.0
    %299 = vmatpush1.msra.mxu0 0.0
    %300 = vmatprep.subr.mxu0 0.0
    %301 = vmatpush1.msra.mxu0 0.0
    %302 = vmatprep.subr.mxu0 0.0
    %303 = vmatpush1.msra.mxu0 0.0
    %304 = vmatprep.subr.mxu0 0.0
    %305 = vmatpush1.msra.mxu0 0.0
    %306 = vmatprep.subr.mxu0 0.0
    %307 = vmatpush1.msra.mxu0 0.0
    %308 = vmatprep.subr.mxu0 0.0
    %309 = vmatpush1.msra.mxu0 0.0
    %310 = vmatprep.subr.mxu0 0.0
    %311 = vmatpush1.msra.mxu0 0.0
    %312 = vmatprep.subr.mxu0 0.0
    %313 = vmatpush1.msra.mxu0 0.0
    %314 = vmatprep.subr.mxu0 0.0
    %315 = vmatpush1.msra.mxu0 0.0
    %316 = vmatprep.subr.mxu0 0.0
    %317 = vmatpush1.msra.mxu0 0.0
    %318 = vmatprep.subr.mxu0 0.0
    %319 = vmatpush1.msra.mxu0 0.0
    %320 = vmatprep.subr.mxu0 0.0
    %321 = vmatpush1.msra.mxu0 0.0
    %322 = vmatprep.subr.mxu0 0.0
    %323 = vmatpush1.msra.mxu0 0.0
    %324 = vmatprep.mubr.f32.mxu0 0.0
    %325 = vmatmul.mubr.f32.gmra.mrb[0].mxu0 %v256
    %v326 = vpop.f32.mrb[0].mxu0
    %v327 = vadd.f32 0.0, %v326
    %v328 = vpop.f32.mrb[0].mxu0
    %329 = vmatprep.mubr.f32.mxu0 0.0
    %330 = vmatmul.mubr.f32.gmra.mrb[0].mxu0 %v257
    %v331 = vpop.f32.mrb[0].mxu0
    %v332 = vadd.f32 0.0, %v331
    %v333 = vpop.f32.mrb[0].mxu0
    %334 = vmatprep.mubr.f32.mxu0 0.0
    %335 = vmatmul.mubr.f32.gmra.mrb[0].mxu0 %v258
    %v336 = vpop.f32.mrb[0].mxu0
    %v337 = vadd.f32 0.0, %v336
    %v338 = vpop.f32.mrb[0].mxu0
    %339 = vmatprep.mubr.f32.mxu0 0.0
    %340 = vmatmul.mubr.f32.gmra.mrb[0].mxu0 %v259
    %v341 = vpop.f32.mrb[0].mxu0
    %v342 = vadd.f32 0.0, %v341
    %v343 = vpop.f32.mrb[0].mxu0
    %344 = vdwg.mxu0
    %v345 = vld [vmem:[#allocation2 + $0x40] sm:$0xff]
    %v346 = vld [vmem:[#allocation2 + $0x48] sm:$0xff]
    %v347 = vld [vmem:[#allocation2 + $0x50] sm:$0xff]
    %v348 = vld [vmem:[#allocation2 + $0x58] sm:$0xff]
    %v349 = vld [vmem:[#allocation2 + $0x60] sm:$0xff]
    %v350 = vld [vmem:[#allocation2 + $0x68] sm:$0xff]
    %v351 = vld [vmem:[#allocation2 + $0x70] sm:$0xff]
    %v352 = vld [vmem:[#allocation2 + $0x78] sm:$0xff]
    %354 = vset.pattern.permute.xlu0 0
    %355 = vperm.xlu0 %354, %v349
    %v356 = vpop.permute.xlu0 %355
    %359 = vset.pattern.permute.xlu0 0
    %360 = vperm.xlu0 %359, %v350
    %v361 = vpop.permute.xlu0 %360
    %364 = vset.pattern.permute.xlu0 0
    %365 = vperm.xlu0 %364, %v351
    %v366 = vpop.permute.xlu0 %365
    %369 = vset.pattern.permute.xlu0 0
    %370 = vperm.xlu0 %369, %v352
    %v371 = vpop.permute.xlu0 %370
    %v374 = vsel %vm158, %v345, 0
    %v377 = vsel %vm158, %v346, 0
    %v380 = vsel %vm158, %v347, 0
    %v383 = vsel %vm158, %v348, 0
    %385 = vmatprep.subr.mxu0 0.0
    %386 = vmatpush1.msra.mxu0 %v327
    %387 = vmatprep.subr.mxu0 0.0
    %388 = vmatpush1.msra.mxu0 %v332
    %389 = vmatprep.subr.mxu0 0.0
    %390 = vmatpush1.msra.mxu0 %v337
    %391 = vmatprep.subr.mxu0 0.0
    %392 = vmatpush1.msra.mxu0 %v342
    %393 = vmatprep.subr.mxu0 0.0
    %394 = vmatpush1.msra.mxu0 %v256
    %395 = vmatprep.subr.mxu0 0.0
    %396 = vmatpush1.msra.mxu0 %v257
    %397 = vmatprep.subr.mxu0 0.0
    %398 = vmatpush1.msra.mxu0 %v258
    %399 = vmatprep.subr.mxu0 0.0
    %400 = vmatpush1.msra.mxu0 %v259
    %401 = vmatprep.subr.mxu0 0.0
    %402 = vmatpush1.msra.mxu0 0.0
    %403 = vmatprep.subr.mxu0 0.0
    %404 = vmatpush1.msra.mxu0 0.0
    %405 = vmatprep.subr.mxu0 0.0
    %406 = vmatpush1.msra.mxu0 0.0
    %407 = vmatprep.subr.mxu0 0.0
    %408 = vmatpush1.msra.mxu0 0.0
    %409 = vmatprep.subr.mxu0 0.0
    %410 = vmatpush1.msra.mxu0 0.0
    %411 = vmatprep.subr.mxu0 0.0
    %412 = vmatpush1.msra.mxu0 0.0
    %413 = vmatprep.subr.mxu0 0.0
    %414 = vmatpush1.msra.mxu0 0.0
    %415 = vmatprep.subr.mxu0 0.0
    %416 = vmatpush1.msra.mxu0 0.0
    %417 = vmatprep.subr.mxu0 0.0
    %418 = vmatpush1.msra.mxu0 0.0
    %419 = vmatprep.subr.mxu0 0.0
    %420 = vmatpush1.msra.mxu0 0.0
    %421 = vmatprep.subr.mxu0 0.0
    %422 = vmatpush1.msra.mxu0 0.0
    %423 = vmatprep.subr.mxu0 0.0
    %424 = vmatpush1.msra.mxu0 0.0
    %425 = vmatprep.subr.mxu0 0.0
    %426 = vmatpush1.msra.mxu0 0.0
    %427 = vmatprep.subr.mxu0 0.0
    %428 = vmatpush1.msra.mxu0 0.0
    %429 = vmatprep.subr.mxu0 0.0
    %430 = vmatpush1.msra.mxu0 0.0
    %431 = vmatprep.subr.mxu0 0.0
    %432 = vmatpush1.msra.mxu0 0.0
    %433 = vmatprep.subr.mxu0 0.0
    %434 = vmatpush1.msra.mxu0 0.0
    %435 = vmatprep.subr.mxu0 0.0
    %436 = vmatpush1.msra.mxu0 0.0
    %437 = vmatprep.subr.mxu0 0.0
    %438 = vmatpush1.msra.mxu0 0.0
    %439 = vmatprep.subr.mxu0 0.0
    %440 = vmatpush1.msra.mxu0 0.0
    %441 = vmatprep.subr.mxu0 0.0
    %442 = vmatpush1.msra.mxu0 0.0
    %443 = vmatprep.subr.mxu0 0.0
    %444 = vmatpush1.msra.mxu0 0.0
    %445 = vmatprep.subr.mxu0 0.0
    %446 = vmatpush1.msra.mxu0 0.0
    %447 = vmatprep.subr.mxu0 0.0
    %448 = vmatpush1.msra.mxu0 0.0
    %449 = vmatprep.mubr.f32.mxu0 0.0
    %450 = vmatmul.mubr.f32.gmra.mrb[0].mxu0 %v374
    %v451 = vpop.f32.mrb[0].mxu0
    %v452 = vadd.f32 %v356, %v451
    %v453 = vpop.f32.mrb[0].mxu0
    %454 = vmatprep.mubr.f32.mxu0 0.0
    %455 = vmatmul.mubr.f32.gmra.mrb[0].mxu0 %v377
    %v456 = vpop.f32.mrb[0].mxu0
    %v457 = vadd.f32 %v361, %v456
    %v458 = vpop.f32.mrb[0].mxu0
    %459 = vmatprep.mubr.f32.mxu0 0.0
    %460 = vmatmul.mubr.f32.gmra.mrb[0].mxu0 %v380
    %v461 = vpop.f32.mrb[0].mxu0
    %v462 = vadd.f32 %v366, %v461
    %v463 = vpop.f32.mrb[0].mxu0
    %464 = vmatprep.mubr.f32.mxu0 0.0
    %465 = vmatmul.mubr.f32.gmra.mrb[0].mxu0 %v383
    %v466 = vpop.f32.mrb[0].mxu0
    %v467 = vadd.f32 %v371, %v466
    %v468 = vpop.f32.mrb[0].mxu0
    %469 = vdwg.mxu0
    %v470 = vmax.f32 %v452, 0.0
    %v471 = vmax.f32 %v457, 0.0
    %v472 = vmax.f32 %v462, 0.0
    %v473 = vmax.f32 %v467, 0.0
    %v474 = vadd.f32 %v470, %v25
    %v475 = vadd.f32 %v471, %v26
    %v476 = vadd.f32 %v472, %v27
    %v477 = vadd.f32 %v473, %v28
    %v478 = vmax.f32 %v474, 0.0
    %v479 = vmax.f32 %v475, 0.0
    %v480 = vmax.f32 %v476, 0.0
    %v481 = vmax.f32 %v477, 0.0
    %v482 = vld [vmem:[#allocation2 + $0x180] sm:$0xff]
    %v483 = vld [vmem:[#allocation2 + $0x188] sm:$0xff]
    %v484 = vld [vmem:[#allocation2 + $0x190] sm:$0xff]
    %v485 = vld [vmem:[#allocation2 + $0x198] sm:$0xff]
    %v486 = vld [vmem:[#allocation2 + $0x1a0] sm:$0xff]
    %v487 = vld [vmem:[#allocation2 + $0x1a8] sm:$0xff]
    %v488 = vld [vmem:[#allocation2 + $0x1b0] sm:$0xff]
    %v489 = vld [vmem:[#allocation2 + $0x1b8] sm:$0xff]
    %v490 = vld [vmem:[#allocation2 + $0x1c0] sm:$0xff]
    %v491 = vld [vmem:[#allocation2 + $0x1c8] sm:$0xff]
    %v492 = vld [vmem:[#allocation2 + $0x1d0] sm:$0xff]
    %v493 = vld [vmem:[#allocation2 + $0x1d8] sm:$0xff]
    %v494 = vld [vmem:[#allocation2 + $0x1e0] sm:$0xff]
    %v495 = vld [vmem:[#allocation2 + $0x1e8] sm:$0xff]
    %v496 = vld [vmem:[#allocation2 + $0x1f0] sm:$0xff]
    %v497 = vld [vmem:[#allocation2 + $0x1f8] sm:$0xff]
    %498 = vmatprep.subr.mxu0 0.0
    %499 = vmatpush1.msra.mxu0 %v482
    %500 = vmatprep.subr.mxu0 0.0
    %501 = vmatpush1.msra.mxu0 %v483
    %502 = vmatprep.subr.mxu0 0.0
    %503 = vmatpush1.msra.mxu0 %v484
    %504 = vmatprep.subr.mxu0 0.0
    %505 = vmatpush1.msra.mxu0 %v485
    %506 = vmatprep.subr.mxu0 0.0
    %507 = vmatpush1.msra.mxu0 %v486
    %508 = vmatprep.subr.mxu0 0.0
    %509 = vmatpush1.msra.mxu0 %v487
    %510 = vmatprep.subr.mxu0 0.0
    %511 = vmatpush1.msra.mxu0 %v488
    %512 = vmatprep.subr.mxu0 0.0
    %513 = vmatpush1.msra.mxu0 %v489
    %514 = vmatprep.subr.mxu0 0.0
    %515 = vmatpush1.msra.mxu0 %v490
    %516 = vmatprep.subr.mxu0 0.0
    %517 = vmatpush1.msra.mxu0 %v491
    %518 = vmatprep.subr.mxu0 0.0
    %519 = vmatpush1.msra.mxu0 %v492
    %520 = vmatprep.subr.mxu0 0.0
    %521 = vmatpush1.msra.mxu0 %v493
    %522 = vmatprep.subr.mxu0 0.0
    %523 = vmatpush1.msra.mxu0 %v494
    %524 = vmatprep.subr.mxu0 0.0
    %525 = vmatpush1.msra.mxu0 %v495
    %526 = vmatprep.subr.mxu0 0.0
    %527 = vmatpush1.msra.mxu0 %v496
    %528 = vmatprep.subr.mxu0 0.0
    %529 = vmatpush1.msra.mxu0 %v497
    %530 = vmatprep.subr.mxu0 0.0
    %531 = vmatpush1.msra.mxu0 0.0
    %532 = vmatprep.subr.mxu0 0.0
    %533 = vmatpush1.msra.mxu0 0.0
    %534 = vmatprep.subr.mxu0 0.0
    %535 = vmatpush1.msra.mxu0 0.0
    %536 = vmatprep.subr.mxu0 0.0
    %537 = vmatpush1.msra.mxu0 0.0
    %538 = vmatprep.subr.mxu0 0.0
    %539 = vmatpush1.msra.mxu0 0.0
    %540 = vmatprep.subr.mxu0 0.0
    %541 = vmatpush1.msra.mxu0 0.0
    %542 = vmatprep.subr.mxu0 0.0
    %543 = vmatpush1.msra.mxu0 0.0
    %544 = vmatprep.subr.mxu0 0.0
    %545 = vmatpush1.msra.mxu0 0.0
    %546 = vmatprep.subr.mxu0 0.0
    %547 = vmatpush1.msra.mxu0 0.0
    %548 = vmatprep.subr.mxu0 0.0
    %549 = vmatpush1.msra.mxu0 0.0
    %550 = vmatprep.subr.mxu0 0.0
    %551 = vmatpush1.msra.mxu0 0.0
    %552 = vmatprep.subr.mxu0 0.0
    %553 = vmatpush1.msra.mxu0 0.0
    %554 = vmatprep.subr.mxu0 0.0
    %555 = vmatpush1.msra.mxu0 0.0
    %556 = vmatprep.subr.mxu0 0.0
    %557 = vmatpush1.msra.mxu0 0.0
    %558 = vmatprep.subr.mxu0 0.0
    %559 = vmatpush1.msra.mxu0 0.0
    %560 = vmatprep.subr.mxu0 0.0
    %561 = vmatpush1.msra.mxu0 0.0
    %562 = vmatprep.mubr.f32.mxu0 0.0
    %563 = vmatmul.mubr.f32.gmra.mrb[0].mxu0 %v478
    %v564 = vpop.f32.mrb[0].mxu0
    %v565 = vadd.f32 0.0, %v564
    %v566 = vpop.f32.mrb[0].mxu0
    %567 = vmatprep.mubr.f32.mxu0 0.0
    %568 = vmatmul.mubr.f32.gmra.mrb[0].mxu0 %v479
    %v569 = vpop.f32.mrb[0].mxu0
    %v570 = vadd.f32 0.0, %v569
    %v571 = vpop.f32.mrb[0].mxu0
    %572 = vmatprep.mubr.f32.mxu0 0.0
    %573 = vmatmul.mubr.f32.gmra.mrb[0].mxu0 %v480
    %v574 = vpop.f32.mrb[0].mxu0
    %v575 = vadd.f32 0.0, %v574
    %v576 = vpop.f32.mrb[0].mxu0
    %577 = vmatprep.mubr.f32.mxu0 0.0
    %578 = vmatmul.mubr.f32.gmra.mrb[0].mxu0 %v481
    %v579 = vpop.f32.mrb[0].mxu0
    %v580 = vadd.f32 0.0, %v579
    %v581 = vpop.f32.mrb[0].mxu0
    %582 = vdwg.mxu0
    %v583 = vld [vmem:[#allocation2 + $0x80] sm:$0xff]
    %v584 = vld [vmem:[#allocation2 + $0x88] sm:$0xff]
    %v585 = vld [vmem:[#allocation2 + $0x90] sm:$0xff]
    %v586 = vld [vmem:[#allocation2 + $0x98] sm:$0xff]
    %v587 = vld [vmem:[#allocation2 + $0xa0] sm:$0xff]
    %v588 = vld [vmem:[#allocation2 + $0xa8] sm:$0xff]
    %v589 = vld [vmem:[#allocation2 + $0xb0] sm:$0xff]
    %v590 = vld [vmem:[#allocation2 + $0xb8] sm:$0xff]
    %592 = vset.pattern.permute.xlu0 0
    %593 = vperm.xlu0 %592, %v587
    %v594 = vpop.permute.xlu0 %593
    %597 = vset.pattern.permute.xlu0 0
    %598 = vperm.xlu0 %597, %v588
    %v599 = vpop.permute.xlu0 %598
    %602 = vset.pattern.permute.xlu0 0
    %603 = vperm.xlu0 %602, %v589
    %v604 = vpop.permute.xlu0 %603
    %607 = vset.pattern.permute.xlu0 0
    %608 = vperm.xlu0 %607, %v590
    %v609 = vpop.permute.xlu0 %608
    %v612 = vsel %vm158, %v583, 0
    %v615 = vsel %vm158, %v584, 0
    %v618 = vsel %vm158, %v585, 0
    %v621 = vsel %vm158, %v586, 0
    %623 = vmatprep.subr.mxu0 0.0
    %624 = vmatpush1.msra.mxu0 %v565
    %625 = vmatprep.subr.mxu0 0.0
    %626 = vmatpush1.msra.mxu0 %v570
    %627 = vmatprep.subr.mxu0 0.0
    %628 = vmatpush1.msra.mxu0 %v575
    %629 = vmatprep.subr.mxu0 0.0
    %630 = vmatpush1.msra.mxu0 %v580
    %631 = vmatprep.subr.mxu0 0.0
    %632 = vmatpush1.msra.mxu0 %v478
    %633 = vmatprep.subr.mxu0 0.0
    %634 = vmatpush1.msra.mxu0 %v479
    %635 = vmatprep.subr.mxu0 0.0
    %636 = vmatpush1.msra.mxu0 %v480
    %637 = vmatprep.subr.mxu0 0.0
    %638 = vmatpush1.msra.mxu0 %v481
    %639 = vmatprep.subr.mxu0 0.0
    %640 = vmatpush1.msra.mxu0 0.0
    %641 = vmatprep.subr.mxu0 0.0
    %642 = vmatpush1.msra.mxu0 0.0
    %643 = vmatprep.subr.mxu0 0.0
    %644 = vmatpush1.msra.mxu0 0.0
    %645 = vmatprep.subr.mxu0 0.0
    %646 = vmatpush1.msra.mxu0 0.0
    %647 = vmatprep.subr.mxu0 0.0
    %648 = vmatpush1.msra.mxu0 0.0
    %649 = vmatprep.subr.mxu0 0.0
    %650 = vmatpush1.msra.mxu0 0.0
    %651 = vmatprep.subr.mxu0 0.0
    %652 = vmatpush1.msra.mxu0 0.0
    %653 = vmatprep.subr.mxu0 0.0
    %654 = vmatpush1.msra.mxu0 0.0
    %655 = vmatprep.subr.mxu0 0.0
    %656 = vmatpush1.msra.mxu0 0.0
    %657 = vmatprep.subr.mxu0 0.0
    %658 = vmatpush1.msra.mxu0 0.0
    %659 = vmatprep.subr.mxu0 0.0
    %660 = vmatpush1.msra.mxu0 0.0
    %661 = vmatprep.subr.mxu0 0.0
    %662 = vmatpush1.msra.mxu0 0.0
    %663 = vmatprep.subr.mxu0 0.0
    %664 = vmatpush1.msra.mxu0 0.0
    %665 = vmatprep.subr.mxu0 0.0
    %666 = vmatpush1.msra.mxu0 0.0
    %667 = vmatprep.subr.mxu0 0.0
    %668 = vmatpush1.msra.mxu0 0.0
    %669 = vmatprep.subr.mxu0 0.0
    %670 = vmatpush1.msra.mxu0 0.0
    %671 = vmatprep.subr.mxu0 0.0
    %672 = vmatpush1.msra.mxu0 0.0
    %673 = vmatprep.subr.mxu0 0.0
    %674 = vmatpush1.msra.mxu0 0.0
    %675 = vmatprep.subr.mxu0 0.0
    %676 = vmatpush1.msra.mxu0 0.0
    %677 = vmatprep.subr.mxu0 0.0
    %678 = vmatpush1.msra.mxu0 0.0
    %679 = vmatprep.subr.mxu0 0.0
    %680 = vmatpush1.msra.mxu0 0.0
    %681 = vmatprep.subr.mxu0 0.0
    %682 = vmatpush1.msra.mxu0 0.0
    %683 = vmatprep.subr.mxu0 0.0
    %684 = vmatpush1.msra.mxu0 0.0
    %685 = vmatprep.subr.mxu0 0.0
    %686 = vmatpush1.msra.mxu0 0.0
    %687 = vmatprep.mubr.f32.mxu0 0.0
    %688 = vmatmul.mubr.f32.gmra.mrb[0].mxu0 %v612
    %v689 = vpop.f32.mrb[0].mxu0
    %v690 = vadd.f32 %v594, %v689
    %v691 = vpop.f32.mrb[0].mxu0
    %692 = vmatprep.mubr.f32.mxu0 0.0
    %693 = vmatmul.mubr.f32.gmra.mrb[0].mxu0 %v615
    %v694 = vpop.f32.mrb[0].mxu0
    %v695 = vadd.f32 %v599, %v694
    %v696 = vpop.f32.mrb[0].mxu0
    %697 = vmatprep.mubr.f32.mxu0 0.0
    %698 = vmatmul.mubr.f32.gmra.mrb[0].mxu0 %v618
    %v699 = vpop.f32.mrb[0].mxu0
    %v700 = vadd.f32 %v604, %v699
    %v701 = vpop.f32.mrb[0].mxu0
    %702 = vmatprep.mubr.f32.mxu0 0.0
    %703 = vmatmul.mubr.f32.gmra.mrb[0].mxu0 %v621
    %v704 = vpop.f32.mrb[0].mxu0
    %v705 = vadd.f32 %v609, %v704
    %v706 = vpop.f32.mrb[0].mxu0
    %707 = vdwg.mxu0
    %v708 = vmax.f32 %v690, 0.0
    %v709 = vmax.f32 %v695, 0.0
    %v710 = vmax.f32 %v700, 0.0
    %v711 = vmax.f32 %v705, 0.0
    %712 = vmatprep.subr.mxu0 0.0
    %713 = vmatpush1.msra.mxu0 %v482
    %714 = vmatprep.subr.mxu0 0.0
    %715 = vmatpush1.msra.mxu0 %v483
    %716 = vmatprep.subr.mxu0 0.0
    %717 = vmatpush1.msra.mxu0 %v484
    %718 = vmatprep.subr.mxu0 0.0
    %719 = vmatpush1.msra.mxu0 %v485
    %720 = vmatprep.subr.mxu0 0.0
    %721 = vmatpush1.msra.mxu0 %v486
    %722 = vmatprep.subr.mxu0 0.0
    %723 = vmatpush1.msra.mxu0 %v487
    %724 = vmatprep.subr.mxu0 0.0
    %725 = vmatpush1.msra.mxu0 %v488
    %726 = vmatprep.subr.mxu0 0.0
    %727 = vmatpush1.msra.mxu0 %v489
    %728 = vmatprep.subr.mxu0 0.0
    %729 = vmatpush1.msra.mxu0 %v490
    %730 = vmatprep.subr.mxu0 0.0
    %731 = vmatpush1.msra.mxu0 %v491
    %732 = vmatprep.subr.mxu0 0.0
    %733 = vmatpush1.msra.mxu0 %v492
    %734 = vmatprep.subr.mxu0 0.0
    %735 = vmatpush1.msra.mxu0 %v493
    %736 = vmatprep.subr.mxu0 0.0
    %737 = vmatpush1.msra.mxu0 %v494
    %738 = vmatprep.subr.mxu0 0.0
    %739 = vmatpush1.msra.mxu0 %v495
    %740 = vmatprep.subr.mxu0 0.0
    %741 = vmatpush1.msra.mxu0 %v496
    %742 = vmatprep.subr.mxu0 0.0
    %743 = vmatpush1.msra.mxu0 %v497
    %744 = vmatprep.subr.mxu0 0.0
    %745 = vmatpush1.msra.mxu0 0.0
    %746 = vmatprep.subr.mxu0 0.0
    %747 = vmatpush1.msra.mxu0 0.0
    %748 = vmatprep.subr.mxu0 0.0
    %749 = vmatpush1.msra.mxu0 0.0
    %750 = vmatprep.subr.mxu0 0.0
    %751 = vmatpush1.msra.mxu0 0.0
    %752 = vmatprep.subr.mxu0 0.0
    %753 = vmatpush1.msra.mxu0 0.0
    %754 = vmatprep.subr.mxu0 0.0
    %755 = vmatpush1.msra.mxu0 0.0
    %756 = vmatprep.subr.mxu0 0.0
    %757 = vmatpush1.msra.mxu0 0.0
    %758 = vmatprep.subr.mxu0 0.0
    %759 = vmatpush1.msra.mxu0 0.0
    %760 = vmatprep.subr.mxu0 0.0
    %761 = vmatpush1.msra.mxu0 0.0
    %762 = vmatprep.subr.mxu0 0.0
    %763 = vmatpush1.msra.mxu0 0.0
    %764 = vmatprep.subr.mxu0 0.0
    %765 = vmatpush1.msra.mxu0 0.0
    %766 = vmatprep.subr.mxu0 0.0
    %767 = vmatpush1.msra.mxu0 0.0
    %768 = vmatprep.subr.mxu0 0.0
    %769 = vmatpush1.msra.mxu0 0.0
    %770 = vmatprep.subr.mxu0 0.0
    %771 = vmatpush1.msra.mxu0 0.0
    %772 = vmatprep.subr.mxu0 0.0
    %773 = vmatpush1.msra.mxu0 0.0
    %774 = vmatprep.subr.mxu0 0.0
    %775 = vmatpush1.msra.mxu0 0.0
    %776 = vmatprep.mubr.f32.mxu0 0.0
    %777 = vmatmul.mubr.f32.gmra.mrb[0].mxu0 %v708
    %v778 = vpop.f32.mrb[0].mxu0
    %v779 = vadd.f32 0.0, %v778
    %v780 = vpop.f32.mrb[0].mxu0
    %781 = vmatprep.mubr.f32.mxu0 0.0
    %782 = vmatmul.mubr.f32.gmra.mrb[0].mxu0 %v709
    %v783 = vpop.f32.mrb[0].mxu0
    %v784 = vadd.f32 0.0, %v783
    %v785 = vpop.f32.mrb[0].mxu0
    %786 = vmatprep.mubr.f32.mxu0 0.0
    %787 = vmatmul.mubr.f32.gmra.mrb[0].mxu0 %v710
    %v788 = vpop.f32.mrb[0].mxu0
    %v789 = vadd.f32 0.0, %v788
    %v790 = vpop.f32.mrb[0].mxu0
    %791 = vmatprep.mubr.f32.mxu0 0.0
    %792 = vmatmul.mubr.f32.gmra.mrb[0].mxu0 %v711
    %v793 = vpop.f32.mrb[0].mxu0
    %v794 = vadd.f32 0.0, %v793
    %v795 = vpop.f32.mrb[0].mxu0
    %796 = vdwg.mxu0
    %v797 = vld [vmem:[#allocation2 + $0xc0] sm:$0xff]
    %v798 = vld [vmem:[#allocation2 + $0xc8] sm:$0xff]
    %v799 = vld [vmem:[#allocation2 + $0xd0] sm:$0xff]
    %v800 = vld [vmem:[#allocation2 + $0xd8] sm:$0xff]
    %v801 = vld [vmem:[#allocation2 + $0xe0] sm:$0xff]
    %v802 = vld [vmem:[#allocation2 + $0xe8] sm:$0xff]
    %v803 = vld [vmem:[#allocation2 + $0xf0] sm:$0xff]
    %v804 = vld [vmem:[#allocation2 + $0xf8] sm:$0xff]
    %806 = vset.pattern.permute.xlu0 0
    %807 = vperm.xlu0 %806, %v801
    %v808 = vpop.permute.xlu0 %807
    %811 = vset.pattern.permute.xlu0 0
    %812 = vperm.xlu0 %811, %v802
    %v813 = vpop.permute.xlu0 %812
    %816 = vset.pattern.permute.xlu0 0
    %817 = vperm.xlu0 %816, %v803
    %v818 = vpop.permute.xlu0 %817
    %821 = vset.pattern.permute.xlu0 0
    %822 = vperm.xlu0 %821, %v804
    %v823 = vpop.permute.xlu0 %822
    %v826 = vsel %vm158, %v797, 0
    %v829 = vsel %vm158, %v798, 0
    %v832 = vsel %vm158, %v799, 0
    %v835 = vsel %vm158, %v800, 0
    %837 = vmatprep.subr.mxu0 0.0
    %838 = vmatpush1.msra.mxu0 %v779
    %839 = vmatprep.subr.mxu0 0.0
    %840 = vmatpush1.msra.mxu0 %v784
    %841 = vmatprep.subr.mxu0 0.0
    %842 = vmatpush1.msra.mxu0 %v789
    %843 = vmatprep.subr.mxu0 0.0
    %844 = vmatpush1.msra.mxu0 %v794
    %845 = vmatprep.subr.mxu0 0.0
    %846 = vmatpush1.msra.mxu0 %v708
    %847 = vmatprep.subr.mxu0 0.0
    %848 = vmatpush1.msra.mxu0 %v709
    %849 = vmatprep.subr.mxu0 0.0
    %850 = vmatpush1.msra.mxu0 %v710
    %851 = vmatprep.subr.mxu0 0.0
    %852 = vmatpush1.msra.mxu0 %v711
    %853 = vmatprep.subr.mxu0 0.0
    %854 = vmatpush1.msra.mxu0 0.0
    %855 = vmatprep.subr.mxu0 0.0
    %856 = vmatpush1.msra.mxu0 0.0
    %857 = vmatprep.subr.mxu0 0.0
    %858 = vmatpush1.msra.mxu0 0.0
    %859 = vmatprep.subr.mxu0 0.0
    %860 = vmatpush1.msra.mxu0 0.0
    %861 = vmatprep.subr.mxu0 0.0
    %862 = vmatpush1.msra.mxu0 0.0
    %863 = vmatprep.subr.mxu0 0.0
    %864 = vmatpush1.msra.mxu0 0.0
    %865 = vmatprep.subr.mxu0 0.0
    %866 = vmatpush1.msra.mxu0 0.0
    %867 = vmatprep.subr.mxu0 0.0
    %868 = vmatpush1.msra.mxu0 0.0
    %869 = vmatprep.subr.mxu0 0.0
    %870 = vmatpush1.msra.mxu0 0.0
    %871 = vmatprep.subr.mxu0 0.0
    %872 = vmatpush1.msra.mxu0 0.0
    %873 = vmatprep.subr.mxu0 0.0
    %874 = vmatpush1.msra.mxu0 0.0
    %875 = vmatprep.subr.mxu0 0.0
    %876 = vmatpush1.msra.mxu0 0.0
    %877 = vmatprep.subr.mxu0 0.0
    %878 = vmatpush1.msra.mxu0 0.0
    %879 = vmatprep.subr.mxu0 0.0
    %880 = vmatpush1.msra.mxu0 0.0
    %881 = vmatprep.subr.mxu0 0.0
    %882 = vmatpush1.msra.mxu0 0.0
    %883 = vmatprep.subr.mxu0 0.0
    %884 = vmatpush1.msra.mxu0 0.0
    %885 = vmatprep.subr.mxu0 0.0
    %886 = vmatpush1.msra.mxu0 0.0
    %887 = vmatprep.subr.mxu0 0.0
    %888 = vmatpush1.msra.mxu0 0.0
    %889 = vmatprep.subr.mxu0 0.0
    %890 = vmatpush1.msra.mxu0 0.0
    %891 = vmatprep.subr.mxu0 0.0
    %892 = vmatpush1.msra.mxu0 0.0
    %893 = vmatprep.subr.mxu0 0.0
    %894 = vmatpush1.msra.mxu0 0.0
    %895 = vmatprep.subr.mxu0 0.0
    %896 = vmatpush1.msra.mxu0 0.0
    %897 = vmatprep.subr.mxu0 0.0
    %898 = vmatpush1.msra.mxu0 0.0
    %899 = vmatprep.subr.mxu0 0.0
    %900 = vmatpush1.msra.mxu0 0.0
    %901 = vmatprep.mubr.f32.mxu0 0.0
    %902 = vmatmul.mubr.f32.gmra.mrb[0].mxu0 %v826
    %v903 = vpop.f32.mrb[0].mxu0
    %v904 = vadd.f32 %v808, %v903
    %v905 = vpop.f32.mrb[0].mxu0
    %906 = vmatprep.mubr.f32.mxu0 0.0
    %907 = vmatmul.mubr.f32.gmra.mrb[0].mxu0 %v829
    %v908 = vpop.f32.mrb[0].mxu0
    %v909 = vadd.f32 %v813, %v908
    %v910 = vpop.f32.mrb[0].mxu0
    %911 = vmatprep.mubr.f32.mxu0 0.0
    %912 = vmatmul.mubr.f32.gmra.mrb[0].mxu0 %v832
    %v913 = vpop.f32.mrb[0].mxu0
    %v914 = vadd.f32 %v818, %v913
    %v915 = vpop.f32.mrb[0].mxu0
    %916 = vmatprep.mubr.f32.mxu0 0.0
    %917 = vmatmul.mubr.f32.gmra.mrb[0].mxu0 %v835
    %v918 = vpop.f32.mrb[0].mxu0
    %v919 = vadd.f32 %v823, %v918
    %v920 = vpop.f32.mrb[0].mxu0
    %921 = vdwg.mxu0
    %v922 = vmax.f32 %v904, 0.0
    %v923 = vmax.f32 %v909, 0.0
    %v924 = vmax.f32 %v914, 0.0
    %v925 = vmax.f32 %v919, 0.0
    %v926 = vadd.f32 %v922, %v478
    %v927 = vadd.f32 %v923, %v479
    %v928 = vadd.f32 %v924, %v480
    %v929 = vadd.f32 %v925, %v481
    %v930 = vmax.f32 %v926, 0.0
    %v931 = vmax.f32 %v927, 0.0
    %v932 = vmax.f32 %v928, 0.0
    %v933 = vmax.f32 %v929, 0.0
    %934 = vst [vmem:[%s2] sm:$0xff] %v930
    %935 = vst [vmem:[%s2 + $0x8] sm:$0xff] %v931
    %936 = vst [vmem:[%s2 + $0x10] sm:$0xff] %v932
    %937 = vst [vmem:[%s2 + $0x18] sm:$0xff] %v933
    // Predicated region
    $region14: #{causal_conv_net_forward.1} parent=1 // pred_check
      _
    $region15: #{causal_conv_net_forward.1} parent=1 // pred_check_branch
      %939 = sbr.rel (0) target = $region17
    $region16: #{causal_conv_net_forward.1} parent=1 // pred_region
      _
    $region17: #{causal_conv_net_forward.1} parent=1 // pred_fallthru
      _
    // Predicated region
    $region18: #{causal_conv_net_forward.1} parent=1 // pred_check
      _
    $region19: #{causal_conv_net_forward.1} parent=1 // pred_check_branch
      %941 = sbr.rel (0) target = $region21
    $region20: #{causal_conv_net_forward.1} parent=1 // pred_region
      _
    $region21: #{causal_conv_net_forward.1} parent=1 // pred_fallthru
      _
    %942 = vsyncpa [#allocation3], 1

</llo_original>
